<compile_context>
chip_gen: v7x
topology: tpu7x:2x2x1
jax: 0.10.0
libtpu: 0.0.40
codegen_flags: <defaults>
</compile_context>

<pallas_src>
import functools

import jax
import jax.numpy as jnp
from jax import lax
from jax.experimental import pallas as pl
from jax.experimental.pallas import tpu as pltpu


def _round_up(n, m):
    return ((n + m - 1) // m) * m


def _softplus(x):
    # Numerically-stable softplus; matches torch.nn.Softplus (beta=1) to f32
    # precision (threshold=20 only switches between branches that agree).
    return jnp.maximum(x, 0.0) + jnp.log1p(jnp.exp(-jnp.abs(x)))


def _qphi_kernel(x_ref, w1b1_ref, w2b2_ref, o_ref, *, d_in, h_pad):
    # x_ref:    (B, d_in)               f32 activations
    # w1b1_ref: (d_in_rows, h_pad)      rows [0, d_in) = W1, row d_in = b1, rest 0
    # w2b2_ref: (h_pad + 8, z_pad)      rows [0, h) = W2 (rest of [0,h_pad) are 0),
    #                                   row h_pad = b2
    # o_ref:    (B, z_pad)              lane-dense output (real z in first columns)
    x = x_ref[...]

    w1 = w1b1_ref[:d_in, :]                 # (d_in, h_pad) — tile-aligned slice
    b1 = w1b1_ref[d_in:d_in + 1, :]         # (1, h_pad)
    h = jnp.dot(x, w1, preferred_element_type=jnp.float32) + b1
    h = _softplus(h)                        # padded cols -> log(2), killed by zero W2 rows

    w2 = w2b2_ref[:h_pad, :]                # (h_pad, z_pad)
    b2 = w2b2_ref[h_pad:h_pad + 1, :]       # (1, z_pad)
    z = jnp.dot(h, w2, preferred_element_type=jnp.float32) + b2

    o_ref[...] = z.astype(o_ref.dtype)


@jax.jit
def qphi_forward(x, w1, b1, w2, b2):
    """x: (B, d_in) f32; w1: (d_in, h); b1: (h,); w2: (h, z); b2: (z,).

    Weights use the math layout [in_features, out_features] (transpose of
    PyTorch nn.Linear's stored [out_features, in_features]).
    """
    B, d_in = x.shape
    h = w1.shape[1]
    z = w2.shape[1]

    h_pad = _round_up(h, 128)               # lane-dense hidden
    z_pad = _round_up(z, 128)               # lane-dense output (unmasked vst)
    d_in_rows = _round_up(d_in + 1, 8)      # W1 rows + bias row, sublane aligned

    dtype = x.dtype
    # Pack W1 with b1 as an extra row; zero-pad columns to h_pad.
    w1b1 = jnp.zeros((d_in_rows, h_pad), dtype)
    w1b1 = w1b1.at[:d_in, :h].set(w1.astype(dtype))
    w1b1 = w1b1.at[d_in, :h].set(b1.astype(dtype))

    # Pack W2 (zero-padded to h_pad rows / z_pad cols) with b2 as row h_pad.
    w2b2 = jnp.zeros((h_pad + 8, z_pad), dtype)
    w2b2 = w2b2.at[:h, :z].set(w2.astype(dtype))
    w2b2 = w2b2.at[h_pad, :z].set(b2.astype(dtype))

    kernel = functools.partial(_qphi_kernel, d_in=d_in, h_pad=h_pad)
    vmem = pltpu.MemorySpace.VMEM

    out_padded = pl.pallas_call(
        kernel,
        out_shape=jax.ShapeDtypeStruct((B, z_pad), dtype),
        in_specs=[
            pl.BlockSpec(memory_space=vmem),
            pl.BlockSpec(memory_space=vmem),
            pl.BlockSpec(memory_space=vmem),
        ],
        out_specs=pl.BlockSpec(memory_space=vmem),
    )(x, w1b1, w2b2)

    return out_padded[:, :z]


def qphi_reference(x, w1, b1, w2, b2):
    h = jax.nn.softplus(jnp.dot(x, w1, precision=lax.Precision.HIGHEST) + b1)
    return jnp.dot(h, w2, precision=lax.Precision.HIGHEST) + b2


if __name__ == "__main__":
    # Module hyperparameters (QPhi defaults: hidden=50, z=10).
    x_concat_u_size = 32
    hidden_size = 50
    z_size = 10
    batch = 8

    key = jax.random.PRNGKey(0)
    k_x, k_w1, k_b1, k_w2, k_b2 = jax.random.split(key, 5)

    x = jax.random.normal(k_x, (batch, x_concat_u_size), dtype=jnp.float32)
    # Deterministic parameter init (uniform, like PyTorch's default Linear init).
    lim1 = 1.0 / (x_concat_u_size ** 0.5)
    lim2 = 1.0 / (hidden_size ** 0.5)
    w1 = jax.random.uniform(k_w1, (x_concat_u_size, hidden_size),
                            minval=-lim1, maxval=lim1, dtype=jnp.float32)
    b1 = jax.random.uniform(k_b1, (hidden_size,),
                            minval=-lim1, maxval=lim1, dtype=jnp.float32)
    w2 = jax.random.uniform(k_w2, (hidden_size, z_size),
                            minval=-lim2, maxval=lim2, dtype=jnp.float32)
    b2 = jax.random.uniform(k_b2, (z_size,),
                            minval=-lim2, maxval=lim2, dtype=jnp.float32)

    out = qphi_forward(x, w1, b1, w2, b2)
    out = jax.block_until_ready(out)

    ref = qphi_reference(x, w1, b1, w2, b2)
    assert out.shape == (batch, z_size), f"bad shape {out.shape}"
    assert jnp.allclose(out, ref, atol=1e-4, rtol=1e-4), "mismatch vs reference"

    print("KERNEL_OK")
</pallas_src>

<mosaic_0001>
module attributes {stable_mosaic.version = 11 : i64} {
  func.func @_qphi_kernel(%arg0: memref<8x32xf32, #tpu.memory_space<vmem>>, %arg1: memref<40x128xf32, #tpu.memory_space<vmem>>, %arg2: memref<136x128xf32, #tpu.memory_space<vmem>>, %arg3: memref<8x128xf32, #tpu.memory_space<vmem>>) attributes {dimension_semantics = [], scalar_prefetch = 0 : i64, scratch_operands = 0 : i64, tpu.core_type = #tpu.core_type<tc>} {
    %c0 = arith.constant 0 : index
    %c0_0 = arith.constant 0 : index
    %0 = vector.load %arg0[%c0, %c0_0] : memref<8x32xf32, #tpu.memory_space<vmem>>, vector<8x32xf32>
    %c0_1 = arith.constant 0 : index
    %c0_2 = arith.constant 0 : index
    %1 = vector.load %arg1[%c0_1, %c0_2] : memref<40x128xf32, #tpu.memory_space<vmem>>, vector<32x128xf32>
    %c32 = arith.constant 32 : index
    %c0_3 = arith.constant 0 : index
    %2 = vector.load %arg1[%c32, %c0_3] : memref<40x128xf32, #tpu.memory_space<vmem>>, vector<1x128xf32>
    %cst = arith.constant dense<0.000000e+00> : vector<8x128xf32>
    %3 = tpu.matmul %0, %1, %cst {dimension_numbers = #tpu.dot_dimension_numbers<[1], [0], [0], [1], [0, 0, 1, 1], [], []>} : vector<8x32xf32>, vector<32x128xf32>, vector<8x128xf32> -> vector<8x128xf32>
    %4 = vector.broadcast %2 : vector<1x128xf32> to vector<8x128xf32>
    %5 = arith.addf %3, %4 : vector<8x128xf32>
    %cst_4 = arith.constant 0.000000e+00 : f32
    %6 = vector.broadcast %cst_4 : f32 to vector<8x128xf32>
    %7 = arith.maximumf %5, %6 : vector<8x128xf32>
    %8 = math.absf %5 : vector<8x128xf32>
    %cst_5 = arith.constant 0.000000e+00 : f32
    %9 = vector.broadcast %cst_5 : f32 to vector<8x128xf32>
    %10 = arith.subf %9, %8 : vector<8x128xf32>
    %11 = math.exp %10 : vector<8x128xf32>
    %12 = math.log1p %11 : vector<8x128xf32>
    %13 = arith.addf %7, %12 : vector<8x128xf32>
    %c0_6 = arith.constant 0 : index
    %c0_7 = arith.constant 0 : index
    %14 = vector.load %arg2[%c0_6, %c0_7] : memref<136x128xf32, #tpu.memory_space<vmem>>, vector<128x128xf32>
    %c128 = arith.constant 128 : index
    %c0_8 = arith.constant 0 : index
    %15 = vector.load %arg2[%c128, %c0_8] : memref<136x128xf32, #tpu.memory_space<vmem>>, vector<1x128xf32>
    %cst_9 = arith.constant dense<0.000000e+00> : vector<8x128xf32>
    %16 = tpu.matmul %13, %14, %cst_9 {dimension_numbers = #tpu.dot_dimension_numbers<[1], [0], [0], [1], [0, 0, 1, 1], [], []>} : vector<8x128xf32>, vector<128x128xf32>, vector<8x128xf32> -> vector<8x128xf32>
    %17 = vector.broadcast %15 : vector<1x128xf32> to vector<8x128xf32>
    %18 = arith.addf %16, %17 : vector<8x128xf32>
    %c0_10 = arith.constant 0 : index
    %c0_11 = arith.constant 0 : index
    %19 = vector.load %arg3[%c0_10, %c0_11] : memref<8x128xf32, #tpu.memory_space<vmem>>, vector<8x128xf32>
    tpu.vector_store %arg3[%c0_10, %c0_11], %18 {strides = array<i32>} : memref<8x128xf32, #tpu.memory_space<vmem>>, vector<8x128xf32>,
    return
  }
}

</mosaic_0001>

<llo_original>
// kernel: qphi_forward.1
$region0: #{qphi_forward.1}
  #allocation0 [shape = 'u32[]', space=smem, size = 0x4, offset = 0x4, fixed_abs, tag = 'smem constant byte address 0x4 - core index']
  #allocation1 [shape = 'u32[144,128]{1,0:T(1,128)}', space=vmem, size = 0x12000, scoped, tag = 'internal scratch']
  %s0 = inlined_call_operand.vmem [shape: f32[8,32], index: 0, kind: input, shape index: {}]
  %s1 = inlined_call_operand.vmem [shape: f32[40,128], index: 1, kind: input, shape index: {}]
  %s2 = inlined_call_operand.vmem [shape: f32[136,128], index: 2, kind: input, shape index: {}]
  %s3 = inlined_call_operand.hbm [shape: f32[8,128], index: 3, kind: output, shape index: {}]
  %s4 = sld [smem:[#allocation0]]
  $region22: #{qphi_forward.1} parent=0
    _
  %s6 = ssub.s32 1, %s4
  %s7 = scalar_select 0, %s6, %s4
  $region1: #{qphi_forward.1} parent=0
    #allocation2 [shape = 'u8[4096]{0}', space=vmem, size = 0x1000, scoped, tag = 'output window, operand 0, single buffered']
    #allocation3 [shape = 's32[1]{0}', space=sflag, size = 0x4, scoped, tag = 'scoped memory for qphi_forward.1']
    %8 = vsyncpa [#allocation3], 0
    // Predicated region
    $region2: #{qphi_forward.1} parent=1 // pred_check
      _
    $region3: #{qphi_forward.1} parent=1 // pred_check_branch
      %10 = sbr.rel (0) target = $region5
    $region4: #{qphi_forward.1} parent=1 // pred_region
      _
    $region5: #{qphi_forward.1} parent=1 // pred_fallthru
      _
    // Predicated region
    $region6: #{qphi_forward.1} parent=1 // pred_check
      _
    $region7: #{qphi_forward.1} parent=1 // pred_check_branch
      %12 = sbr.rel (0) target = $region9
    $region8: #{qphi_forward.1} parent=1 // pred_region
      _
    $region9: #{qphi_forward.1} parent=1 // pred_fallthru
      _
    // Predicated region
    $region10: #{qphi_forward.1} parent=1 // pred_check
      _
    $region11: #{qphi_forward.1} parent=1 // pred_check_branch
      %14 = sbr.rel (0) target = $region13
    $region12: #{qphi_forward.1} parent=1 // pred_region
      _
    $region13: #{qphi_forward.1} parent=1 // pred_fallthru
      _
    %v15 = vld [vmem:[%s0] sm:$0xff]
    %v16 = vld [vmem:[%s1] sm:$0xff]
    %v17 = vld [vmem:[%s1 + $0x8] sm:$0xff]
    %v18 = vld [vmem:[%s1 + $0x10] sm:$0xff]
    %v19 = vld [vmem:[%s1 + $0x18] sm:$0xff]
    %v20 = vld [vmem:[%s1 + $0x20] sm:$0x1]
    %v21 = vlaneseq
    %v22 = vshrl.u32 %v21, 7
    %v23 = vsub.s32 0, %v22
    %v24 = vrot.slane %v20, %v23
    %vm25 = vcmask 261120
    %v27 = vsel %vm25, %v15, 0
    %29 = vmatprep.subr.mxu0 0.0
    %30 = vmatpush1.msra.mxu0 %v16
    %31 = vmatprep.subr.mxu0 0.0
    %32 = vmatpush1.msra.mxu0 %v17
    %33 = vmatprep.subr.mxu0 0.0
    %34 = vmatpush1.msra.mxu0 %v18
    %35 = vmatprep.subr.mxu0 0.0
    %36 = vmatpush1.msra.mxu0 %v19
    %37 = vmatprep.subr.mxu0 0.0
    %38 = vmatpush1.msra.mxu0 0.0
    %39 = vmatprep.subr.mxu0 0.0
    %40 = vmatpush1.msra.mxu0 0.0
    %41 = vmatprep.subr.mxu0 0.0
    %42 = vmatpush1.msra.mxu0 0.0
    %43 = vmatprep.subr.mxu0 0.0
    %44 = vmatpush1.msra.mxu0 0.0
    %45 = vmatprep.subr.mxu0 0.0
    %46 = vmatpush1.msra.mxu0 0.0
    %47 = vmatprep.subr.mxu0 0.0
    %48 = vmatpush1.msra.mxu0 0.0
    %49 = vmatprep.subr.mxu0 0.0
    %50 = vmatpush1.msra.mxu0 0.0
    %51 = vmatprep.subr.mxu0 0.0
    %52 = vmatpush1.msra.mxu0 0.0
    %53 = vmatprep.subr.mxu0 0.0
    %54 = vmatpush1.msra.mxu0 0.0
    %55 = vmatprep.subr.mxu0 0.0
    %56 = vmatpush1.msra.mxu0 0.0
    %57 = vmatprep.subr.mxu0 0.0
    %58 = vmatpush1.msra.mxu0 0.0
    %59 = vmatprep.subr.mxu0 0.0
    %60 = vmatpush1.msra.mxu0 0.0
    %61 = vmatprep.subr.mxu0 0.0
    %62 = vmatpush1.msra.mxu0 0.0
    %63 = vmatprep.subr.mxu0 0.0
    %64 = vmatpush1.msra.mxu0 0.0
    %65 = vmatprep.subr.mxu0 0.0
    %66 = vmatpush1.msra.mxu0 0.0
    %67 = vmatprep.subr.mxu0 0.0
    %68 = vmatpush1.msra.mxu0 0.0
    %69 = vmatprep.subr.mxu0 0.0
    %70 = vmatpush1.msra.mxu0 0.0
    %71 = vmatprep.subr.mxu0 0.0
    %72 = vmatpush1.msra.mxu0 0.0
    %73 = vmatprep.subr.mxu0 0.0
    %74 = vmatpush1.msra.mxu0 0.0
    %75 = vmatprep.subr.mxu0 0.0
    %76 = vmatpush1.msra.mxu0 0.0
    %77 = vmatprep.subr.mxu0 0.0
    %78 = vmatpush1.msra.mxu0 0.0
    %79 = vmatprep.subr.mxu0 0.0
    %80 = vmatpush1.msra.mxu0 0.0
    %81 = vmatprep.subr.mxu0 0.0
    %82 = vmatpush1.msra.mxu0 0.0
    %83 = vmatprep.subr.mxu0 0.0
    %84 = vmatpush1.msra.mxu0 0.0
    %85 = vmatprep.subr.mxu0 0.0
    %86 = vmatpush1.msra.mxu0 0.0
    %87 = vmatprep.subr.mxu0 0.0
    %88 = vmatpush1.msra.mxu0 0.0
    %89 = vmatprep.subr.mxu0 0.0
    %90 = vmatpush1.msra.mxu0 0.0
    %91 = vmatprep.subr.mxu0 0.0
    %92 = vmatpush1.msra.mxu0 0.0
    %93 = vmatprep.mubr.f32.mxu0 0.0
    %94 = vmatmul.mubr.f32.gmra.mrb[0].mxu0 %v27
    %v95 = vpop.f32.mrb[0].mxu0
    %v96 = vadd.f32 %v24, %v95
    %v97 = vpop.f32.mrb[0].mxu0
    %98 = vdwg.mxu0
    %v99 = vmax.f32 %v96, 0.0
    %v100 = vand.u32 2147483647, %v96
    %v101 = vsub.f32 0.0, %v100
    %v102 = vmul.f32 %v101, 1.442695
    %v103 = vpow.pop %v102
    %v104 = vadd.f32 %v103, 1.0
    %v105 = vlog2.pop %v104
    %v106 = vmul.f32 %v105, 0.6931472
    %v107 = vmul.f32 -0.5, %v103
    %v108 = vadd.f32 %v107, 1.0
    %v109 = vmul.f32 %v108, %v103
    %v110 = vand.u32 2147483647, %v103
    %vm111 = vcmp.lt.f32.partialorder %v110, 0.0004427343
    %v112 = vsel %vm111, %v109, %v106
    %v113 = vadd.f32 %v99, %v112
    %v114 = vld [vmem:[%s2] sm:$0xff]
    %v115 = vld [vmem:[%s2 + $0x8] sm:$0xff]
    %v116 = vld [vmem:[%s2 + $0x10] sm:$0xff]
    %v117 = vld [vmem:[%s2 + $0x18] sm:$0xff]
    %v118 = vld [vmem:[%s2 + $0x20] sm:$0xff]
    %v119 = vld [vmem:[%s2 + $0x28] sm:$0xff]
    %v120 = vld [vmem:[%s2 + $0x30] sm:$0xff]
    %v121 = vld [vmem:[%s2 + $0x38] sm:$0xff]
    %v122 = vld [vmem:[%s2 + $0x40] sm:$0xff]
    %v123 = vld [vmem:[%s2 + $0x48] sm:$0xff]
    %v124 = vld [vmem:[%s2 + $0x50] sm:$0xff]
    %v125 = vld [vmem:[%s2 + $0x58] sm:$0xff]
    %v126 = vld [vmem:[%s2 + $0x60] sm:$0xff]
    %v127 = vld [vmem:[%s2 + $0x68] sm:$0xff]
    %v128 = vld [vmem:[%s2 + $0x70] sm:$0xff]
    %v129 = vld [vmem:[%s2 + $0x78] sm:$0xff]
    %v130 = vld [vmem:[%s2 + $0x80] sm:$0x1]
    %v131 = vlaneseq
    %v132 = vshrl.u32 %v131, 7
    %v133 = vsub.s32 0, %v132
    %v134 = vrot.slane %v130, %v133
    %135 = vmatprep.subr.mxu0 0.0
    %136 = vmatpush1.msra.mxu0 %v114
    %137 = vmatprep.subr.mxu0 0.0
    %138 = vmatpush1.msra.mxu0 %v115
    %139 = vmatprep.subr.mxu0 0.0
    %140 = vmatpush1.msra.mxu0 %v116
    %141 = vmatprep.subr.mxu0 0.0
    %142 = vmatpush1.msra.mxu0 %v117
    %143 = vmatprep.subr.mxu0 0.0
    %144 = vmatpush1.msra.mxu0 %v118
    %145 = vmatprep.subr.mxu0 0.0
    %146 = vmatpush1.msra.mxu0 %v119
    %147 = vmatprep.subr.mxu0 0.0
    %148 = vmatpush1.msra.mxu0 %v120
    %149 = vmatprep.subr.mxu0 0.0
    %150 = vmatpush1.msra.mxu0 %v121
    %151 = vmatprep.subr.mxu0 0.0
    %152 = vmatpush1.msra.mxu0 %v122
    %153 = vmatprep.subr.mxu0 0.0
    %154 = vmatpush1.msra.mxu0 %v123
    %155 = vmatprep.subr.mxu0 0.0
    %156 = vmatpush1.msra.mxu0 %v124
    %157 = vmatprep.subr.mxu0 0.0
    %158 = vmatpush1.msra.mxu0 %v125
    %159 = vmatprep.subr.mxu0 0.0
    %160 = vmatpush1.msra.mxu0 %v126
    %161 = vmatprep.subr.mxu0 0.0
    %162 = vmatpush1.msra.mxu0 %v127
    %163 = vmatprep.subr.mxu0 0.0
    %164 = vmatpush1.msra.mxu0 %v128
    %165 = vmatprep.subr.mxu0 0.0
    %166 = vmatpush1.msra.mxu0 %v129
    %167 = vmatprep.subr.mxu0 0.0
    %168 = vmatpush1.msra.mxu0 0.0
    %169 = vmatprep.subr.mxu0 0.0
    %170 = vmatpush1.msra.mxu0 0.0
    %171 = vmatprep.subr.mxu0 0.0
    %172 = vmatpush1.msra.mxu0 0.0
    %173 = vmatprep.subr.mxu0 0.0
    %174 = vmatpush1.msra.mxu0 0.0
    %175 = vmatprep.subr.mxu0 0.0
    %176 = vmatpush1.msra.mxu0 0.0
    %177 = vmatprep.subr.mxu0 0.0
    %178 = vmatpush1.msra.mxu0 0.0
    %179 = vmatprep.subr.mxu0 0.0
    %180 = vmatpush1.msra.mxu0 0.0
    %181 = vmatprep.subr.mxu0 0.0
    %182 = vmatpush1.msra.mxu0 0.0
    %183 = vmatprep.subr.mxu0 0.0
    %184 = vmatpush1.msra.mxu0 0.0
    %185 = vmatprep.subr.mxu0 0.0
    %186 = vmatpush1.msra.mxu0 0.0
    %187 = vmatprep.subr.mxu0 0.0
    %188 = vmatpush1.msra.mxu0 0.0
    %189 = vmatprep.subr.mxu0 0.0
    %190 = vmatpush1.msra.mxu0 0.0
    %191 = vmatprep.subr.mxu0 0.0
    %192 = vmatpush1.msra.mxu0 0.0
    %193 = vmatprep.subr.mxu0 0.0
    %194 = vmatpush1.msra.mxu0 0.0
    %195 = vmatprep.subr.mxu0 0.0
    %196 = vmatpush1.msra.mxu0 0.0
    %197 = vmatprep.subr.mxu0 0.0
    %198 = vmatpush1.msra.mxu0 0.0
    %199 = vmatprep.mubr.f32.mxu0 0.0
    %200 = vmatmul.mubr.f32.gmra.mrb[0].mxu0 %v113
    %v201 = vpop.f32.mrb[0].mxu0
    %v202 = vadd.f32 %v134, %v201
    %v203 = vpop.f32.mrb[0].mxu0
    %204 = vdwg.mxu0
    %205 = vst [vmem:[#allocation2] sm:$0xff] %v202
    // Predicated region
    $region14: #{qphi_forward.1} parent=1 // pred_check
      _
    $region15: #{qphi_forward.1} parent=1 // pred_check_branch
      %207 = sbr.rel (0) target = $region17
    $region16: #{qphi_forward.1} parent=1 // pred_region
      %s209 = ssub.s32 128, 128
      %210 = vsyncadd [#allocation3], %s209
      %s212 = sshll.u32 [#allocation2], 4
      %s213 = int_to_ptr.vmem [resolvable:$true] %s212
      %215 = dma.vmem_to_hbm [thread:$0]  %s213, 128, %s3, [#allocation3]
    $region17: #{qphi_forward.1} parent=1 // pred_fallthru
      _
    // Predicated region
    $region18: #{qphi_forward.1} parent=1 // pred_check
      _
    $region19: #{qphi_forward.1} parent=1 // pred_check_branch
      %217 = sbr.rel (0) target = $region21
    $region20: #{qphi_forward.1} parent=1 // pred_region
      %218 = dma.done [#allocation3], 128
    $region21: #{qphi_forward.1} parent=1 // pred_fallthru
      _
    %219 = vsyncpa [#allocation3], 1

</llo_original>
